<compile_context>
chip_gen: v7x
topology: tpu7x:2x2x1
jax: 0.10.0
libtpu: 0.0.40
codegen_flags: <defaults>
</compile_context>

<pallas_src>
import functools

import jax
import jax.numpy as jnp
from jax.experimental import pallas as pl
from jax.experimental.pallas import tpu as pltpu


EPS = 1e-5
LANE = 128
SUBLANE = 8
DEFAULT_BATCH_TILE = 512
VMEM_LIMIT = 32 * 1024 * 1024  # safe on v5e/v6e (128 MiB) and v7x (64 MiB physical)


# ----------------------------------------------------------------------------- utils
def _round_up(n, m):
    return (n + m - 1) // m * m


def _pad2d(a, rows, cols):
    return jnp.pad(a, ((0, rows - a.shape[0]), (0, cols - a.shape[1])))


def _finalize_stats(s, inv_n):
    """s = (2, F) [sum, sum_of_squares] -> (mean, 1/sqrt(var+eps)); biased var."""
    mean = s[0:1, :] * inv_n
    var = jnp.maximum(s[1:2, :] * inv_n - mean * mean, 0.0)
    return mean, jax.lax.rsqrt(var + EPS)


# ----------------------------------------------------------------------------- kernels
def _mlp_kernel(x_ref, w1_ref, p1_ref, w2_ref, p2_ref, w3_ref, p3_ref, o_ref):
    """No-batch-norm path: relu(xW1+b1), relu(.W2+b2), .W3+b3.  Grid: batch tiles."""
    dt = w1_ref.dtype
    h = jnp.dot(x_ref[...].astype(dt), w1_ref[...],
                preferred_element_type=jnp.float32) + p1_ref[0:1, :]
    h = jnp.maximum(h, 0.0)
    h = jnp.dot(h.astype(dt), w2_ref[...],
                preferred_element_type=jnp.float32) + p2_ref[0:1, :]
    h = jnp.maximum(h, 0.0)
    h = jnp.dot(h.astype(dt), w3_ref[...],
                preferred_element_type=jnp.float32) + p3_ref[0:1, :]
    o_ref[...] = h.astype(o_ref.dtype)


def _mlp_bn_kernel(x_ref, w1_ref, p1_ref, w2_ref, p2_ref, w3_ref, p3_ref, o_ref,
                   *, n_valid, tb, inv_n):
    """Fused BN path for a single batch tile (full-batch stats inside the block).
    Padded batch rows are masked out of the statistics."""
    row = jax.lax.broadcasted_iota(jnp.int32, (tb, 1), 0)
    valid = row < n_valid

    def bn(z, p_ref):
        zv = jnp.where(valid, z, 0.0)
        mean = jnp.sum(zv, axis=0, keepdims=True) * inv_n
        var = jnp.maximum(jnp.sum(zv * zv, axis=0, keepdims=True) * inv_n
                          - mean * mean, 0.0)
        inv = jax.lax.rsqrt(var + EPS)
        return (z - mean) * (inv * p_ref[1:2, :]) + p_ref[2:3, :]

    dt = w1_ref.dtype
    z = jnp.dot(x_ref[...].astype(dt), w1_ref[...],
                preferred_element_type=jnp.float32) + p1_ref[0:1, :]
    h = jnp.maximum(bn(z, p1_ref), 0.0)
    z = jnp.dot(h.astype(dt), w2_ref[...],
                preferred_element_type=jnp.float32) + p2_ref[0:1, :]
    h = jnp.maximum(bn(z, p2_ref), 0.0)
    z = jnp.dot(h.astype(dt), w3_ref[...],
                preferred_element_type=jnp.float32) + p3_ref[0:1, :]
    o_ref[...] = bn(z, p3_ref).astype(o_ref.dtype)


def _lin_stats_kernel(x_ref, w_ref, p_ref, z_ref, s_ref, *, n_valid, tb):
    """Stage: z = xW + b per batch tile; accumulate masked sum / sum-of-squares
    of z across tiles into the resident (2, F) stats output ("arbitrary" axis)."""
    i = pl.program_id(0)

    @pl.when(i == 0)
    def _():
        s_ref[...] = jnp.zeros_like(s_ref)

    z = jnp.dot(x_ref[...].astype(w_ref.dtype), w_ref[...],
                preferred_element_type=jnp.float32) + p_ref[0:1, :]
    z_ref[...] = z

    row = jax.lax.broadcasted_iota(jnp.int32, (tb, 1), 0) + i * tb
    zv = jnp.where(row < n_valid, z, 0.0)
    s_ref[...] += jnp.concatenate(
        [jnp.sum(zv, axis=0, keepdims=True),
         jnp.sum(zv * zv, axis=0, keepdims=True)], axis=0)


def _bn_relu_lin_stats_kernel(zp_ref, sp_ref, pprev_ref, w_ref, p_ref,
                              z_ref, s_ref, *, n_valid, tb, inv_n):
    """Stage: a = relu(BN(z_prev; full-batch stats)); z = aW + b; accumulate stats."""
    i = pl.program_id(0)

    @pl.when(i == 0)
    def _():
        s_ref[...] = jnp.zeros_like(s_ref)

    mean, inv = _finalize_stats(sp_ref[...], inv_n)
    a = (zp_ref[...] - mean) * (inv * pprev_ref[1:2, :]) + pprev_ref[2:3, :]
    a = jnp.maximum(a, 0.0)

    z = jnp.dot(a.astype(w_ref.dtype), w_ref[...],
                preferred_element_type=jnp.float32) + p_ref[0:1, :]
    z_ref[...] = z

    row = jax.lax.broadcasted_iota(jnp.int32, (tb, 1), 0) + i * tb
    zv = jnp.where(row < n_valid, z, 0.0)
    s_ref[...] += jnp.concatenate(
        [jnp.sum(zv, axis=0, keepdims=True),
         jnp.sum(zv * zv, axis=0, keepdims=True)], axis=0)


def _bn_kernel(zp_ref, sp_ref, p_ref, o_ref, *, inv_n):
    """Final stage: o = BN(z3) per batch tile ("parallel" axis)."""
    mean, inv = _finalize_stats(sp_ref[...], inv_n)
    o_ref[...] = ((zp_ref[...] - mean) * (inv * p_ref[1:2, :])
                  + p_ref[2:3, :]).astype(o_ref.dtype)


# ----------------------------------------------------------------------------- wrapper
def dqn_forward(obs, params, *, input_size, output_size, batch_size=1,
                batch_tile=DEFAULT_BATCH_TILE):
    """Mirrors Model.forward(obs, batch_size)."""
    if obs is None:
        return jnp.zeros((output_size,), jnp.float32)

    batch_norm_on = batch_size != 1
    (w1, b1, w2, b2, w3, b3, g1, bt1, g2, bt2, g3, bt3) = params

    hidden_size = w1.shape[1]
    HP = _round_up(hidden_size, LANE)
    OP = _round_up(output_size, LANE)

    x = jnp.asarray(obs, jnp.float32).reshape(-1, input_size)
    B = x.shape[0]

    batch_tile = _round_up(batch_tile, SUBLANE)
    TB = _round_up(B, SUBLANE) if B <= batch_tile else batch_tile
    B_pad = _round_up(B, TB)
    nt = B_pad // TB

    x_p = _pad2d(x, B_pad, input_size)

    # bf16 weights (MXU-native on v6e/v7x); zero padding keeps the math exact.
    wdt = jnp.bfloat16
    w1_p = _pad2d(w1, input_size, HP).astype(wdt)
    w2_p = _pad2d(w2, HP, HP).astype(wdt)
    w3_p = _pad2d(w3, HP, OP).astype(wdt)

    def pack(b, g, bt, f):  # (bias, gamma, beta) -> one (3, f) f32 slab
        return jnp.concatenate([_pad2d(b.reshape(1, -1), 1, f),
                                _pad2d(g.reshape(1, -1), 1, f),
                                _pad2d(bt.reshape(1, -1), 1, f)],
                               axis=0).astype(jnp.float32)

    p1 = pack(b1, g1, bt1, HP)
    p2 = pack(b2, g2, bt2, HP)
    p3 = pack(b3, g3, bt3, OP)

    def tile_spec(f):   # batch-tiled activation blocks
        return pl.BlockSpec((TB, f), lambda i: (i, 0))

    def full_spec(shape):  # small params: full block, resident across grid steps
        return pl.BlockSpec(shape, lambda i: (0, 0))

    cp_parallel = pltpu.CompilerParams(
        dimension_semantics=("parallel",), vmem_limit_bytes=VMEM_LIMIT)
    cp_arbitrary = pltpu.CompilerParams(
        dimension_semantics=("arbitrary",), vmem_limit_bytes=VMEM_LIMIT)

    fused_flops = 2 * B_pad * (input_size * HP + HP * HP + HP * OP)
    fused_bytes = 4 * B_pad * (input_size + OP) \
        + 2 * (w1_p.size + w2_p.size + w3_p.size) + 4 * (p1.size + p2.size + p3.size)
    fused_cost = pl.CostEstimate(flops=int(fused_flops), transcendentals=0,
                                 bytes_accessed=int(fused_bytes))

    fused_in_specs = [tile_spec(input_size),
                      full_spec(w1_p.shape), full_spec(p1.shape),
                      full_spec(w2_p.shape), full_spec(p2.shape),
                      full_spec(w3_p.shape), full_spec(p3.shape)]
    fused_args = (x_p, w1_p, p1, w2_p, p2, w3_p, p3)

    if not batch_norm_on:
        out_p = pl.pallas_call(
            _mlp_kernel,
            out_shape=jax.ShapeDtypeStruct((B_pad, OP), jnp.float32),
            grid=(nt,),
            in_specs=fused_in_specs,
            out_specs=tile_spec(OP),
            compiler_params=cp_parallel,
            cost_estimate=fused_cost,
        )(*fused_args)
        return out_p[:B, :output_size]

    inv_n = 1.0 / B

    if nt == 1:
        # Whole batch fits in one tile -> fully fused BN kernel.
        out_p = pl.pallas_call(
            functools.partial(_mlp_bn_kernel, n_valid=B, tb=TB, inv_n=inv_n),
            out_shape=jax.ShapeDtypeStruct((B_pad, OP), jnp.float32),
            grid=(nt,),
            in_specs=fused_in_specs,
            out_specs=tile_spec(OP),
            compiler_params=cp_parallel,
            cost_estimate=fused_cost,
        )(*fused_args)
        return out_p[:B, :output_size]

    # Multi-tile batch: staged kernels so BN uses exact full-batch statistics.
    # Stage 1: z1 = xW1 + b1, accumulate stats1 across batch tiles.
    z1, s1 = pl.pallas_call(
        functools.partial(_lin_stats_kernel, n_valid=B, tb=TB),
        out_shape=(jax.ShapeDtypeStruct((B_pad, HP), jnp.float32),
                   jax.ShapeDtypeStruct((2, HP), jnp.float32)),
        grid=(nt,),
        in_specs=[tile_spec(input_size), full_spec(w1_p.shape), full_spec(p1.shape)],
        out_specs=(tile_spec(HP), full_spec((2, HP))),
        compiler_params=cp_arbitrary,
    )(x_p, w1_p, p1)

    # Stage 2: a1 = relu(BN(z1)); z2 = a1 W2 + b2, accumulate stats2.
    z2, s2 = pl.pallas_call(
        functools.partial(_bn_relu_lin_stats_kernel, n_valid=B, tb=TB, inv_n=inv_n),
        out_shape=(jax.ShapeDtypeStruct((B_pad, HP), jnp.float32),
                   jax.ShapeDtypeStruct((2, HP), jnp.float32)),
        grid=(nt,),
        in_specs=[tile_spec(HP), full_spec((2, HP)), full_spec(p1.shape),
                  full_spec(w2_p.shape), full_spec(p2.shape)],
        out_specs=(tile_spec(HP), full_spec((2, HP))),
        compiler_params=cp_arbitrary,
    )(z1, s1, p1, w2_p, p2)

    # Stage 3: a2 = relu(BN(z2)); z3 = a2 W3 + b3, accumulate stats3.
    z3, s3 = pl.pallas_call(
        functools.partial(_bn_relu_lin_stats_kernel, n_valid=B, tb=TB, inv_n=inv_n),
        out_shape=(jax.ShapeDtypeStruct((B_pad, OP), jnp.float32),
                   jax.ShapeDtypeStruct((2, OP), jnp.float32)),
        grid=(nt,),
        in_specs=[tile_spec(HP), full_spec((2, HP)), full_spec(p2.shape),
                  full_spec(w3_p.shape), full_spec(p3.shape)],
        out_specs=(tile_spec(OP), full_spec((2, OP))),
        compiler_params=cp_arbitrary,
    )(z2, s2, p2, w3_p, p3)

    # Stage 4: out = BN(z3).
    out_p = pl.pallas_call(
        functools.partial(_bn_kernel, inv_n=inv_n),
        out_shape=jax.ShapeDtypeStruct((B_pad, OP), jnp.float32),
        grid=(nt,),
        in_specs=[tile_spec(OP), full_spec((2, OP)), full_spec(p3.shape)],
        out_specs=tile_spec(OP),
        compiler_params=cp_parallel,
    )(z3, s3, p3)

    return out_p[:B, :output_size]


# ----------------------------------------------------------------------------- params / reference
def init_params(key, input_size, output_size, hidden_size=100):
    """Deterministic PyTorch-style init: U(-1/sqrt(fan_in), +1/sqrt(fan_in))."""
    def linear(k, fan_in, fan_out):
        kw, kb = jax.random.split(k)
        bound = 1.0 / jnp.sqrt(fan_in)
        w = jax.random.uniform(kw, (fan_in, fan_out), jnp.float32, -bound, bound)
        b = jax.random.uniform(kb, (1, fan_out), jnp.float32, -bound, bound)
        return w, b

    k1, k2, k3 = jax.random.split(key, 3)
    w1, b1 = linear(k1, input_size, hidden_size)
    w2, b2 = linear(k2, hidden_size, hidden_size)
    w3, b3 = linear(k3, hidden_size, output_size)
    g1, bt1 = jnp.ones((1, hidden_size), jnp.float32), jnp.zeros((1, hidden_size), jnp.float32)
    g2, bt2 = jnp.ones((1, hidden_size), jnp.float32), jnp.zeros((1, hidden_size), jnp.float32)
    g3, bt3 = jnp.ones((1, output_size), jnp.float32), jnp.zeros((1, output_size), jnp.float32)
    return (w1, b1, w2, b2, w3, b3, g1, bt1, g2, bt2, g3, bt3)


def _reference(x, params, batch_norm_on):
    """Pure-JAX reference of Model.forward (matmuls in bf16, like the kernel)."""
    (w1, b1, w2, b2, w3, b3, g1, bt1, g2, bt2, g3, bt3) = params

    def dot(a, w):
        return jnp.dot(a.astype(jnp.bfloat16), w.astype(jnp.bfloat16),
                       preferred_element_type=jnp.float32)

    def bn(z, g, b):
        mean = jnp.mean(z, axis=0, keepdims=True)
        var = jnp.mean((z - mean) ** 2, axis=0, keepdims=True)
        return (z - mean) * jax.lax.rsqrt(var + EPS) * g + b

    h = dot(x, w1) + b1
    if batch_norm_on:
        h = bn(h, g1, bt1)
    h = jnp.maximum(h, 0.0)
    h = dot(h, w2) + b2
    if batch_norm_on:
        h = bn(h, g2, bt2)
    h = jnp.maximum(h, 0.0)
    h = dot(h, w3) + b3
    if batch_norm_on:
        h = bn(h, g3, bt3)
    return h


# ----------------------------------------------------------------------------- main
if __name__ == "__main__":
    INPUT_SIZE = 16
    OUTPUT_SIZE = 8
    HIDDEN_SIZE = 100   # module default -> exercises 100 -> 128 lane padding
    BATCH = 4

    key = jax.random.PRNGKey(0)
    kp, kx = jax.random.split(key)
    params = init_params(kp, INPUT_SIZE, OUTPUT_SIZE, HIDDEN_SIZE)
    obs = jax.random.normal(kx, (BATCH, INPUT_SIZE), jnp.float32)

    # batch_size != 1 -> batch-norm path (single-tile fused BN kernel here).
    out_bn = dqn_forward(obs, params, input_size=INPUT_SIZE,
                         output_size=OUTPUT_SIZE, batch_size=BATCH)
    # default batch_size=1 -> plain MLP path (no batch norm).
    out_plain = dqn_forward(obs[:1], params, input_size=INPUT_SIZE,
                            output_size=OUTPUT_SIZE, batch_size=1)

    # Multi-tile BN path: 52 rows with 16-row tiles exercises cross-tile batch
    # statistics and padded-row masking (52 -> 64 padded rows, 4 grid steps).
    BATCH_BIG = 52
    obs_big = jax.random.normal(jax.random.fold_in(kx, 1),
                                (BATCH_BIG, INPUT_SIZE), jnp.float32)
    out_big = dqn_forward(obs_big, params, input_size=INPUT_SIZE,
                          output_size=OUTPUT_SIZE, batch_size=BATCH_BIG,
                          batch_tile=16)

    jax.block_until_ready((out_bn, out_plain, out_big))

    ref_bn = _reference(obs, params, True)
    ref_plain = _reference(obs[:1], params, False)
    ref_big = _reference(obs_big, params, True)

    assert out_bn.shape == (BATCH, OUTPUT_SIZE)
    assert out_plain.shape == (1, OUTPUT_SIZE)
    assert out_big.shape == (BATCH_BIG, OUTPUT_SIZE)
    assert float(jnp.max(jnp.abs(out_bn - ref_bn))) < 5e-2
    assert float(jnp.max(jnp.abs(out_plain - ref_plain))) < 5e-2
    assert float(jnp.max(jnp.abs(out_big - ref_big))) < 5e-2
    print("KERNEL_OK")
</pallas_src>

<mosaic_0001>
module attributes {stable_mosaic.version = 11 : i64} {
  func.func @_mlp_bn_kernel(%arg0: i32, %arg1: memref<8x16xf32, #tpu.memory_space<vmem>>, %arg2: memref<16x128xbf16, #tpu.memory_space<vmem>>, %arg3: memref<3x128xf32, #tpu.memory_space<vmem>>, %arg4: memref<128x128xbf16, #tpu.memory_space<vmem>>, %arg5: memref<3x128xf32, #tpu.memory_space<vmem>>, %arg6: memref<128x128xbf16, #tpu.memory_space<vmem>>, %arg7: memref<3x128xf32, #tpu.memory_space<vmem>>, %arg8: memref<8x128xf32, #tpu.memory_space<vmem>>) attributes {dimension_semantics = [#tpu.dimension_semantics<parallel>], iteration_bounds = array<i64: 1>, scalar_prefetch = 0 : i64, scratch_operands = 0 : i64, tpu.core_type = #tpu.core_type<tc>, window_params = [{transform_indices = @transform_0, window_bounds = array<i64: 8, 16>}, {pipeline_mode = #tpu.pipeline_mode<synchronous>, transform_indices = @transform_1, window_bounds = array<i64: 16, 128>}, {pipeline_mode = #tpu.pipeline_mode<synchronous>, transform_indices = @transform_2, window_bounds = array<i64: 3, 128>}, {pipeline_mode = #tpu.pipeline_mode<synchronous>, transform_indices = @transform_3, window_bounds = array<i64: 128, 128>}, {pipeline_mode = #tpu.pipeline_mode<synchronous>, transform_indices = @transform_4, window_bounds = array<i64: 3, 128>}, {pipeline_mode = #tpu.pipeline_mode<synchronous>, transform_indices = @transform_5, window_bounds = array<i64: 128, 128>}, {pipeline_mode = #tpu.pipeline_mode<synchronous>, transform_indices = @transform_6, window_bounds = array<i64: 3, 128>}, {transform_indices = @transform_7, window_bounds = array<i64: 8, 128>}]} {
    %0 = tpu.iota {dimensions = array<i32: 0>} : vector<8x1xi32>
    %c4_i32 = arith.constant 4 : i32
    %1 = vector.broadcast %c4_i32 : i32 to vector<8x1xi32>
    %2 = arith.cmpi slt, %0, %1 : vector<8x1xi32>
    %c0 = arith.constant 0 : index
    %c0_0 = arith.constant 0 : index
    %3 = vector.load %arg1[%c0, %c0_0] : memref<8x16xf32, #tpu.memory_space<vmem>>, vector<8x16xf32>
    %4 = arith.truncf %3 : vector<8x16xf32> to vector<8x16xbf16>
    %c0_1 = arith.constant 0 : index
    %c0_2 = arith.constant 0 : index
    %5 = vector.load %arg2[%c0_1, %c0_2] : memref<16x128xbf16, #tpu.memory_space<vmem>>, vector<16x128xbf16>
    %cst = arith.constant dense<0.000000e+00> : vector<8x128xf32>
    %6 = tpu.matmul %4, %5, %cst {dimension_numbers = #tpu.dot_dimension_numbers<[1], [0], [0], [1], [0, 0, 1, 1], [], []>} : vector<8x16xbf16>, vector<16x128xbf16>, vector<8x128xf32> -> vector<8x128xf32>
    %c0_3 = arith.constant 0 : index
    %c0_4 = arith.constant 0 : index
    %7 = vector.load %arg3[%c0_3, %c0_4] : memref<3x128xf32, #tpu.memory_space<vmem>>, vector<1x128xf32>
    %8 = vector.broadcast %7 : vector<1x128xf32> to vector<8x128xf32>
    %9 = arith.addf %6, %8 : vector<8x128xf32>
    %cst_5 = arith.constant 0.000000e+00 : f32
    %10 = vector.shape_cast %2 : vector<8x1xi1> to vector<8x1xi1>
    %11 = vector.broadcast %10 : vector<8x1xi1> to vector<8x128xi1>
    %12 = vector.broadcast %cst_5 : f32 to vector<8x128xf32>
    %13 = arith.select %11, %9, %12 : vector<8x128xi1>, vector<8x128xf32>
    %cst_6 = arith.constant dense<0.000000e+00> : vector<128xf32>
    %14 = vector.multi_reduction <add>, %13, %cst_6 [0] : vector<8x128xf32> to vector<128xf32>
    %15 = vector.shape_cast %14 : vector<128xf32> to vector<1x128xf32>
    %cst_7 = arith.constant 2.500000e-01 : f32
    %16 = vector.broadcast %cst_7 : f32 to vector<1x128xf32>
    %17 = arith.mulf %15, %16 : vector<1x128xf32>
    %18 = arith.mulf %13, %13 : vector<8x128xf32>
    %cst_8 = arith.constant dense<0.000000e+00> : vector<128xf32>
    %19 = vector.multi_reduction <add>, %18, %cst_8 [0] : vector<8x128xf32> to vector<128xf32>
    %20 = vector.shape_cast %19 : vector<128xf32> to vector<1x128xf32>
    %cst_9 = arith.constant 2.500000e-01 : f32
    %21 = vector.broadcast %cst_9 : f32 to vector<1x128xf32>
    %22 = arith.mulf %20, %21 : vector<1x128xf32>
    %23 = arith.mulf %17, %17 : vector<1x128xf32>
    %24 = arith.subf %22, %23 : vector<1x128xf32>
    %cst_10 = arith.constant 0.000000e+00 : f32
    %25 = vector.broadcast %cst_10 : f32 to vector<1x128xf32>
    %26 = arith.maximumf %24, %25 : vector<1x128xf32>
    %cst_11 = arith.constant 9.99999974E-6 : f32
    %27 = vector.broadcast %cst_11 : f32 to vector<1x128xf32>
    %28 = arith.addf %26, %27 : vector<1x128xf32>
    %29 = math.rsqrt %28 : vector<1x128xf32>
    %30 = vector.broadcast %17 : vector<1x128xf32> to vector<8x128xf32>
    %31 = arith.subf %9, %30 : vector<8x128xf32>
    %c1 = arith.constant 1 : index
    %c0_12 = arith.constant 0 : index
    %32 = vector.load %arg3[%c1, %c0_12] : memref<3x128xf32, #tpu.memory_space<vmem>>, vector<1x128xf32>
    %33 = arith.mulf %29, %32 : vector<1x128xf32>
    %34 = vector.broadcast %33 : vector<1x128xf32> to vector<8x128xf32>
    %35 = arith.mulf %31, %34 : vector<8x128xf32>
    %c2 = arith.constant 2 : index
    %c0_13 = arith.constant 0 : index
    %36 = vector.load %arg3[%c2, %c0_13] : memref<3x128xf32, #tpu.memory_space<vmem>>, vector<1x128xf32>
    %37 = vector.broadcast %36 : vector<1x128xf32> to vector<8x128xf32>
    %38 = arith.addf %35, %37 : vector<8x128xf32>
    %cst_14 = arith.constant 0.000000e+00 : f32
    %39 = vector.broadcast %cst_14 : f32 to vector<8x128xf32>
    %40 = arith.maximumf %38, %39 : vector<8x128xf32>
    %41 = arith.truncf %40 : vector<8x128xf32> to vector<8x128xbf16>
    %c0_15 = arith.constant 0 : index
    %c0_16 = arith.constant 0 : index
    %42 = vector.load %arg4[%c0_15, %c0_16] : memref<128x128xbf16, #tpu.memory_space<vmem>>, vector<128x128xbf16>
    %cst_17 = arith.constant dense<0.000000e+00> : vector<8x128xf32>
    %43 = tpu.matmul %41, %42, %cst_17 {dimension_numbers = #tpu.dot_dimension_numbers<[1], [0], [0], [1], [0, 0, 1, 1], [], []>} : vector<8x128xbf16>, vector<128x128xbf16>, vector<8x128xf32> -> vector<8x128xf32>
    %c0_18 = arith.constant 0 : index
    %c0_19 = arith.constant 0 : index
    %44 = vector.load %arg5[%c0_18, %c0_19] : memref<3x128xf32, #tpu.memory_space<vmem>>, vector<1x128xf32>
    %45 = vector.broadcast %44 : vector<1x128xf32> to vector<8x128xf32>
    %46 = arith.addf %43, %45 : vector<8x128xf32>
    %cst_20 = arith.constant 0.000000e+00 : f32
    %47 = vector.shape_cast %2 : vector<8x1xi1> to vector<8x1xi1>
    %48 = vector.broadcast %47 : vector<8x1xi1> to vector<8x128xi1>
    %49 = vector.broadcast %cst_20 : f32 to vector<8x128xf32>
    %50 = arith.select %48, %46, %49 : vector<8x128xi1>, vector<8x128xf32>
    %cst_21 = arith.constant dense<0.000000e+00> : vector<128xf32>
    %51 = vector.multi_reduction <add>, %50, %cst_21 [0] : vector<8x128xf32> to vector<128xf32>
    %52 = vector.shape_cast %51 : vector<128xf32> to vector<1x128xf32>
    %cst_22 = arith.constant 2.500000e-01 : f32
    %53 = vector.broadcast %cst_22 : f32 to vector<1x128xf32>
    %54 = arith.mulf %52, %53 : vector<1x128xf32>
    %55 = arith.mulf %50, %50 : vector<8x128xf32>
    %cst_23 = arith.constant dense<0.000000e+00> : vector<128xf32>
    %56 = vector.multi_reduction <add>, %55, %cst_23 [0] : vector<8x128xf32> to vector<128xf32>
    %57 = vector.shape_cast %56 : vector<128xf32> to vector<1x128xf32>
    %cst_24 = arith.constant 2.500000e-01 : f32
    %58 = vector.broadcast %cst_24 : f32 to vector<1x128xf32>
    %59 = arith.mulf %57, %58 : vector<1x128xf32>
    %60 = arith.mulf %54, %54 : vector<1x128xf32>
    %61 = arith.subf %59, %60 : vector<1x128xf32>
    %cst_25 = arith.constant 0.000000e+00 : f32
    %62 = vector.broadcast %cst_25 : f32 to vector<1x128xf32>
    %63 = arith.maximumf %61, %62 : vector<1x128xf32>
    %cst_26 = arith.constant 9.99999974E-6 : f32
    %64 = vector.broadcast %cst_26 : f32 to vector<1x128xf32>
    %65 = arith.addf %63, %64 : vector<1x128xf32>
    %66 = math.rsqrt %65 : vector<1x128xf32>
    %67 = vector.broadcast %54 : vector<1x128xf32> to vector<8x128xf32>
    %68 = arith.subf %46, %67 : vector<8x128xf32>
    %c1_27 = arith.constant 1 : index
    %c0_28 = arith.constant 0 : index
    %69 = vector.load %arg5[%c1_27, %c0_28] : memref<3x128xf32, #tpu.memory_space<vmem>>, vector<1x128xf32>
    %70 = arith.mulf %66, %69 : vector<1x128xf32>
    %71 = vector.broadcast %70 : vector<1x128xf32> to vector<8x128xf32>
    %72 = arith.mulf %68, %71 : vector<8x128xf32>
    %c2_29 = arith.constant 2 : index
    %c0_30 = arith.constant 0 : index
    %73 = vector.load %arg5[%c2_29, %c0_30] : memref<3x128xf32, #tpu.memory_space<vmem>>, vector<1x128xf32>
    %74 = vector.broadcast %73 : vector<1x128xf32> to vector<8x128xf32>
    %75 = arith.addf %72, %74 : vector<8x128xf32>
    %cst_31 = arith.constant 0.000000e+00 : f32
    %76 = vector.broadcast %cst_31 : f32 to vector<8x128xf32>
    %77 = arith.maximumf %75, %76 : vector<8x128xf32>
    %78 = arith.truncf %77 : vector<8x128xf32> to vector<8x128xbf16>
    %c0_32 = arith.constant 0 : index
    %c0_33 = arith.constant 0 : index
    %79 = vector.load %arg6[%c0_32, %c0_33] : memref<128x128xbf16, #tpu.memory_space<vmem>>, vector<128x128xbf16>
    %cst_34 = arith.constant dense<0.000000e+00> : vector<8x128xf32>
    %80 = tpu.matmul %78, %79, %cst_34 {dimension_numbers = #tpu.dot_dimension_numbers<[1], [0], [0], [1], [0, 0, 1, 1], [], []>} : vector<8x128xbf16>, vector<128x128xbf16>, vector<8x128xf32> -> vector<8x128xf32>
    %c0_35 = arith.constant 0 : index
    %c0_36 = arith.constant 0 : index
    %81 = vector.load %arg7[%c0_35, %c0_36] : memref<3x128xf32, #tpu.memory_space<vmem>>, vector<1x128xf32>
    %82 = vector.broadcast %81 : vector<1x128xf32> to vector<8x128xf32>
    %83 = arith.addf %80, %82 : vector<8x128xf32>
    %cst_37 = arith.constant 0.000000e+00 : f32
    %84 = vector.shape_cast %2 : vector<8x1xi1> to vector<8x1xi1>
    %85 = vector.broadcast %84 : vector<8x1xi1> to vector<8x128xi1>
    %86 = vector.broadcast %cst_37 : f32 to vector<8x128xf32>
    %87 = arith.select %85, %83, %86 : vector<8x128xi1>, vector<8x128xf32>
    %cst_38 = arith.constant dense<0.000000e+00> : vector<128xf32>
    %88 = vector.multi_reduction <add>, %87, %cst_38 [0] : vector<8x128xf32> to vector<128xf32>
    %89 = vector.shape_cast %88 : vector<128xf32> to vector<1x128xf32>
    %cst_39 = arith.constant 2.500000e-01 : f32
    %90 = vector.broadcast %cst_39 : f32 to vector<1x128xf32>
    %91 = arith.mulf %89, %90 : vector<1x128xf32>
    %92 = arith.mulf %87, %87 : vector<8x128xf32>
    %cst_40 = arith.constant dense<0.000000e+00> : vector<128xf32>
    %93 = vector.multi_reduction <add>, %92, %cst_40 [0] : vector<8x128xf32> to vector<128xf32>
    %94 = vector.shape_cast %93 : vector<128xf32> to vector<1x128xf32>
    %cst_41 = arith.constant 2.500000e-01 : f32
    %95 = vector.broadcast %cst_41 : f32 to vector<1x128xf32>
    %96 = arith.mulf %94, %95 : vector<1x128xf32>
    %97 = arith.mulf %91, %91 : vector<1x128xf32>
    %98 = arith.subf %96, %97 : vector<1x128xf32>
    %cst_42 = arith.constant 0.000000e+00 : f32
    %99 = vector.broadcast %cst_42 : f32 to vector<1x128xf32>
    %100 = arith.maximumf %98, %99 : vector<1x128xf32>
    %cst_43 = arith.constant 9.99999974E-6 : f32
    %101 = vector.broadcast %cst_43 : f32 to vector<1x128xf32>
    %102 = arith.addf %100, %101 : vector<1x128xf32>
    %103 = math.rsqrt %102 : vector<1x128xf32>
    %104 = vector.broadcast %91 : vector<1x128xf32> to vector<8x128xf32>
    %105 = arith.subf %83, %104 : vector<8x128xf32>
    %c1_44 = arith.constant 1 : index
    %c0_45 = arith.constant 0 : index
    %106 = vector.load %arg7[%c1_44, %c0_45] : memref<3x128xf32, #tpu.memory_space<vmem>>, vector<1x128xf32>
    %107 = arith.mulf %103, %106 : vector<1x128xf32>
    %108 = vector.broadcast %107 : vector<1x128xf32> to vector<8x128xf32>
    %109 = arith.mulf %105, %108 : vector<8x128xf32>
    %c2_46 = arith.constant 2 : index
    %c0_47 = arith.constant 0 : index
    %110 = vector.load %arg7[%c2_46, %c0_47] : memref<3x128xf32, #tpu.memory_space<vmem>>, vector<1x128xf32>
    %111 = vector.broadcast %110 : vector<1x128xf32> to vector<8x128xf32>
    %112 = arith.addf %109, %111 : vector<8x128xf32>
    %c0_48 = arith.constant 0 : index
    %c0_49 = arith.constant 0 : index
    %113 = vector.load %arg8[%c0_48, %c0_49] : memref<8x128xf32, #tpu.memory_space<vmem>>, vector<8x128xf32>
    tpu.vector_store %arg8[%c0_48, %c0_49], %112 {strides = array<i32>} : memref<8x128xf32, #tpu.memory_space<vmem>>, vector<8x128xf32>,
    return
  }
  func.func @transform_0(%arg0: i32) -> (i32, i32) {
    %c0_i32 = arith.constant 0 : i32
    %c0_i32_0 = arith.constant 0 : i32
    return %arg0, %c0_i32 : i32, i32
  }
  func.func @transform_1(%arg0: i32) -> (i32, i32) {
    %c0_i32 = arith.constant 0 : i32
    %c0_i32_0 = arith.constant 0 : i32
    %c0_i32_1 = arith.constant 0 : i32
    return %c0_i32, %c0_i32_0 : i32, i32
  }
  func.func @transform_2(%arg0: i32) -> (i32, i32) {
    %c0_i32 = arith.constant 0 : i32
    %c0_i32_0 = arith.constant 0 : i32
    %c0_i32_1 = arith.constant 0 : i32
    return %c0_i32, %c0_i32_0 : i32, i32
  }
  func.func @transform_3(%arg0: i32) -> (i32, i32) {
    %c0_i32 = arith.constant 0 : i32
    %c0_i32_0 = arith.constant 0 : i32
    %c0_i32_1 = arith.constant 0 : i32
    return %c0_i32, %c0_i32_0 : i32, i32
  }
  func.func @transform_4(%arg0: i32) -> (i32, i32) {
    %c0_i32 = arith.constant 0 : i32
    %c0_i32_0 = arith.constant 0 : i32
    %c0_i32_1 = arith.constant 0 : i32
    return %c0_i32, %c0_i32_0 : i32, i32
  }
  func.func @transform_5(%arg0: i32) -> (i32, i32) {
    %c0_i32 = arith.constant 0 : i32
    %c0_i32_0 = arith.constant 0 : i32
    %c0_i32_1 = arith.constant 0 : i32
    return %c0_i32, %c0_i32_0 : i32, i32
  }
  func.func @transform_6(%arg0: i32) -> (i32, i32) {
    %c0_i32 = arith.constant 0 : i32
    %c0_i32_0 = arith.constant 0 : i32
    %c0_i32_1 = arith.constant 0 : i32
    return %c0_i32, %c0_i32_0 : i32, i32
  }
  func.func @transform_7(%arg0: i32) -> (i32, i32) {
    %c0_i32 = arith.constant 0 : i32
    %c0_i32_0 = arith.constant 0 : i32
    return %arg0, %c0_i32 : i32, i32
  }
}

</mosaic_0001>

<llo_original>
// kernel: tpu_custom_call.1
$region0: #{tpu_custom_call.1}
  #allocation0 [shape = 'u32[]', space=smem, size = 0x4, offset = 0x4, fixed_abs, tag = 'smem constant byte address 0x4 - core index']
  #allocation1 [shape = 'u32[144,128]{1,0:T(1,128)}', space=vmem, size = 0x12000, scoped, tag = 'internal scratch']
  %s0 = inlined_call_operand.hbm [shape: f32[8,16], index: 0, kind: input, shape index: {}]
  %s1 = inlined_call_operand.hbm [shape: bf16[16,128], index: 1, kind: input, shape index: {}]
  %s2 = inlined_call_operand.vmem [shape: f32[3,128], index: 2, kind: input, shape index: {}]
  %s3 = inlined_call_operand.hbm [shape: bf16[128,128], index: 3, kind: input, shape index: {}]
  %s4 = inlined_call_operand.vmem [shape: f32[3,128], index: 4, kind: input, shape index: {}]
  %s5 = inlined_call_operand.hbm [shape: bf16[128,128], index: 5, kind: input, shape index: {}]
  %s6 = inlined_call_operand.vmem [shape: f32[3,128], index: 6, kind: input, shape index: {}]
  %s7 = inlined_call_operand.hbm [shape: f32[8,128], index: 7, kind: output, shape index: {}]
  %s8 = sld [smem:[#allocation0]]
  $region54: #{tpu_custom_call.1} parent=0
    _
  %s10 = ssub.s32 1, %s8
  %s11 = scalar_select 0, %s10, %s8
  $region1: #{tpu_custom_call.1} parent=0
    #allocation2 [shape = 'u8[4096]{0}', space=vmem, size = 0x1000, scoped, tag = 'input window, operand 0, single buffered']
    #allocation3 [shape = 's32[1]{0}', space=sflag, size = 0x4, scoped, tag = 'scoped memory for tpu_custom_call.1']
    #allocation4 [shape = 's32[1]{0}', space=sflag, size = 0x4, scoped, tag = 'scoped memory for tpu_custom_call.1']
    #allocation5 [shape = 'u8[4096]{0}', space=vmem, size = 0x1000, scoped, tag = 'input window, operand 1, single buffered']
    #allocation6 [shape = 's32[1]{0}', space=sflag, size = 0x4, scoped, tag = 'scoped memory for tpu_custom_call.1']
    #allocation7 [shape = 'u8[32768]{0}', space=vmem, size = 0x8000, scoped, tag = 'input window, operand 3, single buffered']
    #allocation8 [shape = 'u8[32768]{0}', space=vmem, size = 0x8000, scoped, tag = 'input window, operand 5, single buffered']
    #allocation9 [shape = 's32[1]{0}', space=sflag, size = 0x4, scoped, tag = 'scoped memory for tpu_custom_call.1']
    #allocation10 [shape = 'u8[4096]{0}', space=vmem, size = 0x1000, scoped, tag = 'output window, operand 0, single buffered']
    %12 = vsyncpa [#allocation3], 0
    %13 = vsyncpa [#allocation6], 0
    %14 = vsyncpa [#allocation9], 0
    %15 = vsyncpa [#allocation4], 0
    // Predicated region
    $region2: #{tpu_custom_call.1} parent=1 // pred_check
      _
    $region3: #{tpu_custom_call.1} parent=1 // pred_check_branch
      %17 = sbr.rel (0) target = $region5
    $region4: #{tpu_custom_call.1} parent=1 // pred_region
      %s19 = ssub.s32 128, 128
      %20 = vsyncadd [#allocation3], %s19
      %s22 = sshll.u32 [#allocation2], 4
      %s23 = int_to_ptr.vmem [resolvable:$true] %s22
      %25 = dma.hbm_to_vmem [thread:$0]  %s0, 128, %s23, [#allocation3]
    $region5: #{tpu_custom_call.1} parent=1 // pred_fallthru
      _
    // Predicated region
    $region6: #{tpu_custom_call.1} parent=1 // pred_check
      _
    $region7: #{tpu_custom_call.1} parent=1 // pred_check_branch
      %27 = sbr.rel (0) target = $region9
    $region8: #{tpu_custom_call.1} parent=1 // pred_region
      %s29 = ssub.s32 128, 128
      %30 = vsyncadd [#allocation6], %s29
      %s31 = sshll.u32 [#allocation5], 4
      %s32 = int_to_ptr.vmem [resolvable:$true] %s31
      %37 = dma.hbm_to_vmem [thread:$0]  %s1, 128, %s32, [#allocation6], 64, 64, 4
    $region9: #{tpu_custom_call.1} parent=1 // pred_fallthru
      _
    // Predicated region
    $region10: #{tpu_custom_call.1} parent=1 // pred_check
      _
    $region11: #{tpu_custom_call.1} parent=1 // pred_check_branch
      %39 = sbr.rel (0) target = $region13
    $region12: #{tpu_custom_call.1} parent=1 // pred_region
      _
    $region13: #{tpu_custom_call.1} parent=1 // pred_fallthru
      _
    // Predicated region
    $region14: #{tpu_custom_call.1} parent=1 // pred_check
      _
    $region15: #{tpu_custom_call.1} parent=1 // pred_check_branch
      %41 = sbr.rel (0) target = $region17
    $region16: #{tpu_custom_call.1} parent=1 // pred_region
      %s43 = ssub.s32 1024, 1024
      %44 = vsyncadd [#allocation6], %s43
      %s45 = sshll.u32 [#allocation7], 4
      %s46 = int_to_ptr.vmem [resolvable:$true] %s45
      %51 = dma.hbm_to_vmem [thread:$0]  %s3, 1024, %s46, [#allocation6], 64, 64, 4
    $region17: #{tpu_custom_call.1} parent=1 // pred_fallthru
      _
    // Predicated region
    $region18: #{tpu_custom_call.1} parent=1 // pred_check
      _
    $region19: #{tpu_custom_call.1} parent=1 // pred_check_branch
      %53 = sbr.rel (0) target = $region21
    $region20: #{tpu_custom_call.1} parent=1 // pred_region
      _
    $region21: #{tpu_custom_call.1} parent=1 // pred_fallthru
      _
    // Predicated region
    $region22: #{tpu_custom_call.1} parent=1 // pred_check
      _
    $region23: #{tpu_custom_call.1} parent=1 // pred_check_branch
      %55 = sbr.rel (0) target = $region25
    $region24: #{tpu_custom_call.1} parent=1 // pred_region
      %s57 = ssub.s32 1024, 1024
      %58 = vsyncadd [#allocation9], %s57
      %s59 = sshll.u32 [#allocation8], 4
      %s60 = int_to_ptr.vmem [resolvable:$true] %s59
      %65 = dma.hbm_to_vmem [thread:$0]  %s5, 1024, %s60, [#allocation9], 64, 64, 4
    $region25: #{tpu_custom_call.1} parent=1 // pred_fallthru
      _
    // Predicated region
    $region26: #{tpu_custom_call.1} parent=1 // pred_check
      _
    $region27: #{tpu_custom_call.1} parent=1 // pred_check_branch
      %67 = sbr.rel (0) target = $region29
    $region28: #{tpu_custom_call.1} parent=1 // pred_region
      _
    $region29: #{tpu_custom_call.1} parent=1 // pred_fallthru
      _
    // Predicated region
    $region30: #{tpu_custom_call.1} parent=1 // pred_check
      _
    $region31: #{tpu_custom_call.1} parent=1 // pred_check_branch
      %69 = sbr.rel (0) target = $region33
    $region32: #{tpu_custom_call.1} parent=1 // pred_region
      %70 = dma.done [#allocation3], 128
    $region33: #{tpu_custom_call.1} parent=1 // pred_fallthru
      _
    // Predicated region
    $region34: #{tpu_custom_call.1} parent=1 // pred_check
      _
    $region35: #{tpu_custom_call.1} parent=1 // pred_check_branch
      %72 = sbr.rel (0) target = $region37
    $region36: #{tpu_custom_call.1} parent=1 // pred_region
      %73 = dma.done [#allocation6], 128
    $region37: #{tpu_custom_call.1} parent=1 // pred_fallthru
      _
    // Predicated region
    $region38: #{tpu_custom_call.1} parent=1 // pred_check
      _
    $region39: #{tpu_custom_call.1} parent=1 // pred_check_branch
      %75 = sbr.rel (0) target = $region41
    $region40: #{tpu_custom_call.1} parent=1 // pred_region
      %76 = dma.done [#allocation6], 1024
    $region41: #{tpu_custom_call.1} parent=1 // pred_fallthru
      _
    // Predicated region
    $region42: #{tpu_custom_call.1} parent=1 // pred_check
      _
    $region43: #{tpu_custom_call.1} parent=1 // pred_check_branch
      %78 = sbr.rel (0) target = $region45
    $region44: #{tpu_custom_call.1} parent=1 // pred_region
      %79 = dma.done [#allocation9], 1024
    $region45: #{tpu_custom_call.1} parent=1 // pred_fallthru
      _
    %v81 = vlaneseq
    %v82 = vshrl.u32 %v81, 7
    %vm83 = vcmp.lt.s32.totalorder %v82, 4
    %v84 = vld [vmem:[#allocation2] sm:$0xff]
    %v85 = vpack.c.bf16 %v84, %v84
    %v86 = vld [vmem:[#allocation5] sm:$0xf]
    %v87 = vld [vmem:[#allocation5 + $0x4] sm:$0xf]
    %v88 = vld [vmem:[%s2] sm:$0x1]
    %v89 = vlaneseq
    %v90 = vshrl.u32 %v89, 7
    %v91 = vsub.s32 0, %v90
    %v92 = vrot.slane %v88, %v91
    %v95 = vunpack.c.l.b16 %v86
    %v96 = vunpack.c.l.b16 %v87
    %v97 = vpack.c.b16 %v96, %v95
    %vm99 = vcmask 130048
    %v101 = vsel %vm99, %v85, 0
    %103 = vmatprep.subr.bf16.mxu0 0
    %104 = vmatpush1.bf16.msra.mxu0 %v97
    %105 = vmatprep.subr.bf16.mxu0 0
    %106 = vmatpush1.bf16.msra.mxu0 0
    %107 = vmatprep.subr.bf16.mxu0 0
    %108 = vmatpush1.bf16.msra.mxu0 0
    %109 = vmatprep.subr.bf16.mxu0 0
    %110 = vmatpush1.bf16.msra.mxu0 0
    %111 = vmatprep.subr.bf16.mxu0 0
    %112 = vmatpush1.bf16.msra.mxu0 0
    %113 = vmatprep.subr.bf16.mxu0 0
    %114 = vmatpush1.bf16.msra.mxu0 0
    %115 = vmatprep.subr.bf16.mxu0 0
    %116 = vmatpush1.bf16.msra.mxu0 0
    %117 = vmatprep.subr.bf16.mxu0 0
    %118 = vmatpush1.bf16.msra.mxu0 0
    %119 = vmatprep.subr.bf16.mxu0 0
    %120 = vmatpush1.bf16.msra.mxu0 0
    %121 = vmatprep.subr.bf16.mxu0 0
    %122 = vmatpush1.bf16.msra.mxu0 0
    %123 = vmatprep.subr.bf16.mxu0 0
    %124 = vmatpush1.bf16.msra.mxu0 0
    %125 = vmatprep.subr.bf16.mxu0 0
    %126 = vmatpush1.bf16.msra.mxu0 0
    %127 = vmatprep.subr.bf16.mxu0 0
    %128 = vmatpush1.bf16.msra.mxu0 0
    %129 = vmatprep.subr.bf16.mxu0 0
    %130 = vmatpush1.bf16.msra.mxu0 0
    %131 = vmatprep.subr.bf16.mxu0 0
    %132 = vmatpush1.bf16.msra.mxu0 0
    %133 = vmatprep.subr.bf16.mxu0 0
    %134 = vmatpush1.bf16.msra.mxu0 0
    %135 = vmatprep.mubr.bf16.mxu0 0
    %136 = vmatmul.mubr.bf16.gmra.mrb[0].mxu0 %v101
    %v137 = vpop.f32.mrb[0].mxu0
    %v138 = vadd.f32 %v92, %v137
    %v139 = vpop.f32.mrb[0].mxu0
    %v140 = vpop.f32.mrb[0].mxu0
    %v141 = vpop.f32.mrb[0].mxu0
    %142 = vdwg.mxu0
    %v143 = vsel %vm83, 1, 0
    %vm144 = vcmp.eq.s32.totalorder %v143, 1
    %v145 = vsel %vm144, %v138, 0.0
    %v146 = vrot.slane %v145, 4
    %v147 = vadd.f32 %v145, %v146
    %v148 = vrot.slane %v147, 2
    %v149 = vadd.f32 %v147, %v148
    %v150 = vrot.slane %v149, 1
    %v151 = vadd.f32 %v149, %v150
    %v152 = vmul.f32 %v151, 0.25
    %v153 = vmul.f32 %v145, %v145
    %v154 = vrot.slane %v153, 4
    %v155 = vadd.f32 %v153, %v154
    %v156 = vrot.slane %v155, 2
    %v157 = vadd.f32 %v155, %v156
    %v158 = vrot.slane %v157, 1
    %v159 = vadd.f32 %v157, %v158
    %v160 = vmul.f32 %v159, 0.25
    %v161 = vmul.f32 %v152, %v152
    %v162 = vsub.f32 %v160, %v161
    %v163 = vmax.f32 %v162, 0.0
    %v164 = vadd.f32 %v163, 1e-05
    %v165 = vrsqrt.pop %v164
    %v166 = vsub.f32 %v138, %v152
    %v167 = vld [vmem:[%s2 + $0x1] sm:$0x1]
    %v168 = vmul.f32 %v165, %v167
    %v169 = vlaneseq
    %v170 = vshrl.u32 %v169, 7
    %v171 = vsub.s32 0, %v170
    %v172 = vrot.slane %v168, %v171
    %v173 = vmul.f32 %v166, %v172
    %v174 = vld [vmem:[%s2 + $0x2] sm:$0x1]
    %v175 = vlaneseq
    %v176 = vshrl.u32 %v175, 7
    %v177 = vsub.s32 0, %v176
    %v178 = vrot.slane %v174, %v177
    %v179 = vadd.f32 %v173, %v178
    %v180 = vmax.f32 %v179, 0.0
    %v181 = vpack.c.bf16 %v180, %v180
    %v182 = vld [vmem:[#allocation7] sm:$0xf]
    %v183 = vld [vmem:[#allocation7 + $0x4] sm:$0xf]
    %v184 = vld [vmem:[#allocation7 + $0x8] sm:$0xf]
    %v185 = vld [vmem:[#allocation7 + $0xc] sm:$0xf]
    %v186 = vld [vmem:[#allocation7 + $0x10] sm:$0xf]
    %v187 = vld [vmem:[#allocation7 + $0x14] sm:$0xf]
    %v188 = vld [vmem:[#allocation7 + $0x18] sm:$0xf]
    %v189 = vld [vmem:[#allocation7 + $0x1c] sm:$0xf]
    %v190 = vld [vmem:[#allocation7 + $0x20] sm:$0xf]
    %v191 = vld [vmem:[#allocation7 + $0x24] sm:$0xf]
    %v192 = vld [vmem:[#allocation7 + $0x28] sm:$0xf]
    %v193 = vld [vmem:[#allocation7 + $0x2c] sm:$0xf]
    %v194 = vld [vmem:[#allocation7 + $0x30] sm:$0xf]
    %v195 = vld [vmem:[#allocation7 + $0x34] sm:$0xf]
    %v196 = vld [vmem:[#allocation7 + $0x38] sm:$0xf]
    %v197 = vld [vmem:[#allocation7 + $0x3c] sm:$0xf]
    %v198 = vld [vmem:[%s4] sm:$0x1]
    %v199 = vlaneseq
    %v200 = vshrl.u32 %v199, 7
    %v201 = vsub.s32 0, %v200
    %v202 = vrot.slane %v198, %v201
    %v219 = vunpack.c.l.b16 %v182
    %v220 = vunpack.c.l.b16 %v183
    %v221 = vunpack.c.l.b16 %v184
    %v222 = vunpack.c.l.b16 %v185
    %v223 = vunpack.c.l.b16 %v186
    %v224 = vunpack.c.l.b16 %v187
    %v225 = vunpack.c.l.b16 %v188
    %v226 = vunpack.c.l.b16 %v189
    %v227 = vunpack.c.l.b16 %v190
    %v228 = vunpack.c.l.b16 %v191
    %v229 = vunpack.c.l.b16 %v192
    %v230 = vunpack.c.l.b16 %v193
    %v231 = vunpack.c.l.b16 %v194
    %v232 = vunpack.c.l.b16 %v195
    %v233 = vunpack.c.l.b16 %v196
    %v234 = vunpack.c.l.b16 %v197
    %v235 = vpack.c.b16 %v220, %v219
    %v236 = vpack.c.b16 %v222, %v221
    %v237 = vpack.c.b16 %v224, %v223
    %v238 = vpack.c.b16 %v226, %v225
    %v239 = vpack.c.b16 %v228, %v227
    %v240 = vpack.c.b16 %v230, %v229
    %v241 = vpack.c.b16 %v232, %v231
    %v242 = vpack.c.b16 %v234, %v233
    %251 = vmatprep.subr.bf16.mxu0 0
    %252 = vmatpush1.bf16.msra.mxu0 %v235
    %253 = vmatprep.subr.bf16.mxu0 0
    %254 = vmatpush1.bf16.msra.mxu0 %v236
    %255 = vmatprep.subr.bf16.mxu0 0
    %256 = vmatpush1.bf16.msra.mxu0 %v237
    %257 = vmatprep.subr.bf16.mxu0 0
    %258 = vmatpush1.bf16.msra.mxu0 %v238
    %259 = vmatprep.subr.bf16.mxu0 0
    %260 = vmatpush1.bf16.msra.mxu0 %v239
    %261 = vmatprep.subr.bf16.mxu0 0
    %262 = vmatpush1.bf16.msra.mxu0 %v240
    %263 = vmatprep.subr.bf16.mxu0 0
    %264 = vmatpush1.bf16.msra.mxu0 %v241
    %265 = vmatprep.subr.bf16.mxu0 0
    %266 = vmatpush1.bf16.msra.mxu0 %v242
    %267 = vmatprep.subr.bf16.mxu0 0
    %268 = vmatpush1.bf16.msra.mxu0 0
    %269 = vmatprep.subr.bf16.mxu0 0
    %270 = vmatpush1.bf16.msra.mxu0 0
    %271 = vmatprep.subr.bf16.mxu0 0
    %272 = vmatpush1.bf16.msra.mxu0 0
    %273 = vmatprep.subr.bf16.mxu0 0
    %274 = vmatpush1.bf16.msra.mxu0 0
    %275 = vmatprep.subr.bf16.mxu0 0
    %276 = vmatpush1.bf16.msra.mxu0 0
    %277 = vmatprep.subr.bf16.mxu0 0
    %278 = vmatpush1.bf16.msra.mxu0 0
    %279 = vmatprep.subr.bf16.mxu0 0
    %280 = vmatpush1.bf16.msra.mxu0 0
    %281 = vmatprep.subr.bf16.mxu0 0
    %282 = vmatpush1.bf16.msra.mxu0 0
    %283 = vmatprep.mubr.bf16.mxu0 0
    %284 = vmatmul.mubr.bf16.gmra.mrb[0].mxu0 %v181
    %v285 = vpop.f32.mrb[0].mxu0
    %v286 = vadd.f32 %v202, %v285
    %v287 = vpop.f32.mrb[0].mxu0
    %v288 = vpop.f32.mrb[0].mxu0
    %v289 = vpop.f32.mrb[0].mxu0
    %290 = vdwg.mxu0
    %v291 = vsel %vm144, %v286, 0.0
    %v292 = vrot.slane %v291, 4
    %v293 = vadd.f32 %v291, %v292
    %v294 = vrot.slane %v293, 2
    %v295 = vadd.f32 %v293, %v294
    %v296 = vrot.slane %v295, 1
    %v297 = vadd.f32 %v295, %v296
    %v298 = vmul.f32 %v297, 0.25
    %v299 = vmul.f32 %v291, %v291
    %v300 = vrot.slane %v299, 4
    %v301 = vadd.f32 %v299, %v300
    %v302 = vrot.slane %v301, 2
    %v303 = vadd.f32 %v301, %v302
    %v304 = vrot.slane %v303, 1
    %v305 = vadd.f32 %v303, %v304
    %v306 = vmul.f32 %v305, 0.25
    %v307 = vmul.f32 %v298, %v298
    %v308 = vsub.f32 %v306, %v307
    %v309 = vmax.f32 %v308, 0.0
    %v310 = vadd.f32 %v309, 1e-05
    %v311 = vrsqrt.pop %v310
    %v312 = vsub.f32 %v286, %v298
    %v313 = vld [vmem:[%s4 + $0x1] sm:$0x1]
    %v314 = vmul.f32 %v311, %v313
    %v315 = vlaneseq
    %v316 = vshrl.u32 %v315, 7
    %v317 = vsub.s32 0, %v316
    %v318 = vrot.slane %v314, %v317
    %v319 = vmul.f32 %v312, %v318
    %v320 = vld [vmem:[%s4 + $0x2] sm:$0x1]
    %v321 = vlaneseq
    %v322 = vshrl.u32 %v321, 7
    %v323 = vsub.s32 0, %v322
    %v324 = vrot.slane %v320, %v323
    %v325 = vadd.f32 %v319, %v324
    %v326 = vmax.f32 %v325, 0.0
    %v327 = vpack.c.bf16 %v326, %v326
    %v328 = vld [vmem:[#allocation8] sm:$0xf]
    %v329 = vld [vmem:[#allocation8 + $0x4] sm:$0xf]
    %v330 = vld [vmem:[#allocation8 + $0x8] sm:$0xf]
    %v331 = vld [vmem:[#allocation8 + $0xc] sm:$0xf]
    %v332 = vld [vmem:[#allocation8 + $0x10] sm:$0xf]
    %v333 = vld [vmem:[#allocation8 + $0x14] sm:$0xf]
    %v334 = vld [vmem:[#allocation8 + $0x18] sm:$0xf]
    %v335 = vld [vmem:[#allocation8 + $0x1c] sm:$0xf]
    %v336 = vld [vmem:[#allocation8 + $0x20] sm:$0xf]
    %v337 = vld [vmem:[#allocation8 + $0x24] sm:$0xf]
    %v338 = vld [vmem:[#allocation8 + $0x28] sm:$0xf]
    %v339 = vld [vmem:[#allocation8 + $0x2c] sm:$0xf]
    %v340 = vld [vmem:[#allocation8 + $0x30] sm:$0xf]
    %v341 = vld [vmem:[#allocation8 + $0x34] sm:$0xf]
    %v342 = vld [vmem:[#allocation8 + $0x38] sm:$0xf]
    %v343 = vld [vmem:[#allocation8 + $0x3c] sm:$0xf]
    %v344 = vld [vmem:[%s6] sm:$0x1]
    %v345 = vlaneseq
    %v346 = vshrl.u32 %v345, 7
    %v347 = vsub.s32 0, %v346
    %v348 = vrot.slane %v344, %v347
    %v365 = vunpack.c.l.b16 %v328
    %v366 = vunpack.c.l.b16 %v329
    %v367 = vunpack.c.l.b16 %v330
    %v368 = vunpack.c.l.b16 %v331
    %v369 = vunpack.c.l.b16 %v332
    %v370 = vunpack.c.l.b16 %v333
    %v371 = vunpack.c.l.b16 %v334
    %v372 = vunpack.c.l.b16 %v335
    %v373 = vunpack.c.l.b16 %v336
    %v374 = vunpack.c.l.b16 %v337
    %v375 = vunpack.c.l.b16 %v338
    %v376 = vunpack.c.l.b16 %v339
    %v377 = vunpack.c.l.b16 %v340
    %v378 = vunpack.c.l.b16 %v341
    %v379 = vunpack.c.l.b16 %v342
    %v380 = vunpack.c.l.b16 %v343
    %v381 = vpack.c.b16 %v366, %v365
    %v382 = vpack.c.b16 %v368, %v367
    %v383 = vpack.c.b16 %v370, %v369
    %v384 = vpack.c.b16 %v372, %v371
    %v385 = vpack.c.b16 %v374, %v373
    %v386 = vpack.c.b16 %v376, %v375
    %v387 = vpack.c.b16 %v378, %v377
    %v388 = vpack.c.b16 %v380, %v379
    %397 = vmatprep.subr.bf16.mxu0 0
    %398 = vmatpush1.bf16.msra.mxu0 %v381
    %399 = vmatprep.subr.bf16.mxu0 0
    %400 = vmatpush1.bf16.msra.mxu0 %v382
    %401 = vmatprep.subr.bf16.mxu0 0
    %402 = vmatpush1.bf16.msra.mxu0 %v383
    %403 = vmatprep.subr.bf16.mxu0 0
    %404 = vmatpush1.bf16.msra.mxu0 %v384
    %405 = vmatprep.subr.bf16.mxu0 0
    %406 = vmatpush1.bf16.msra.mxu0 %v385
    %407 = vmatprep.subr.bf16.mxu0 0
    %408 = vmatpush1.bf16.msra.mxu0 %v386
    %409 = vmatprep.subr.bf16.mxu0 0
    %410 = vmatpush1.bf16.msra.mxu0 %v387
    %411 = vmatprep.subr.bf16.mxu0 0
    %412 = vmatpush1.bf16.msra.mxu0 %v388
    %413 = vmatprep.subr.bf16.mxu0 0
    %414 = vmatpush1.bf16.msra.mxu0 0
    %415 = vmatprep.subr.bf16.mxu0 0
    %416 = vmatpush1.bf16.msra.mxu0 0
    %417 = vmatprep.subr.bf16.mxu0 0
    %418 = vmatpush1.bf16.msra.mxu0 0
    %419 = vmatprep.subr.bf16.mxu0 0
    %420 = vmatpush1.bf16.msra.mxu0 0
    %421 = vmatprep.subr.bf16.mxu0 0
    %422 = vmatpush1.bf16.msra.mxu0 0
    %423 = vmatprep.subr.bf16.mxu0 0
    %424 = vmatpush1.bf16.msra.mxu0 0
    %425 = vmatprep.subr.bf16.mxu0 0
    %426 = vmatpush1.bf16.msra.mxu0 0
    %427 = vmatprep.subr.bf16.mxu0 0
    %428 = vmatpush1.bf16.msra.mxu0 0
    %429 = vmatprep.mubr.bf16.mxu0 0
    %430 = vmatmul.mubr.bf16.gmra.mrb[0].mxu0 %v327
    %v431 = vpop.f32.mrb[0].mxu0
    %v432 = vadd.f32 %v348, %v431
    %v433 = vpop.f32.mrb[0].mxu0
    %v434 = vpop.f32.mrb[0].mxu0
    %v435 = vpop.f32.mrb[0].mxu0
    %436 = vdwg.mxu0
    %v437 = vsel %vm144, %v432, 0.0
    %v438 = vrot.slane %v437, 4
    %v439 = vadd.f32 %v437, %v438
    %v440 = vrot.slane %v439, 2
    %v441 = vadd.f32 %v439, %v440
    %v442 = vrot.slane %v441, 1
    %v443 = vadd.f32 %v441, %v442
    %v444 = vmul.f32 %v443, 0.25
    %v445 = vmul.f32 %v437, %v437
    %v446 = vrot.slane %v445, 4
    %v447 = vadd.f32 %v445, %v446
    %v448 = vrot.slane %v447, 2
    %v449 = vadd.f32 %v447, %v448
    %v450 = vrot.slane %v449, 1
    %v451 = vadd.f32 %v449, %v450
    %v452 = vmul.f32 %v451, 0.25
    %v453 = vmul.f32 %v444, %v444
    %v454 = vsub.f32 %v452, %v453
    %v455 = vmax.f32 %v454, 0.0
    %v456 = vadd.f32 %v455, 1e-05
    %v457 = vrsqrt.pop %v456
    %v458 = vsub.f32 %v432, %v444
    %v459 = vld [vmem:[%s6 + $0x1] sm:$0x1]
    %v460 = vmul.f32 %v457, %v459
    %v461 = vlaneseq
    %v462 = vshrl.u32 %v461, 7
    %v463 = vsub.s32 0, %v462
    %v464 = vrot.slane %v460, %v463
    %v465 = vmul.f32 %v458, %v464
    %v466 = vld [vmem:[%s6 + $0x2] sm:$0x1]
    %v467 = vlaneseq
    %v468 = vshrl.u32 %v467, 7
    %v469 = vsub.s32 0, %v468
    %v470 = vrot.slane %v466, %v469
    %v471 = vadd.f32 %v465, %v470
    %472 = vst [vmem:[#allocation10] sm:$0xff] %v471
    // Predicated region
    $region46: #{tpu_custom_call.1} parent=1 // pred_check
      _
    $region47: #{tpu_custom_call.1} parent=1 // pred_check_branch
      %474 = sbr.rel (0) target = $region49
    $region48: #{tpu_custom_call.1} parent=1 // pred_region
      %s476 = ssub.s32 128, 128
      %477 = vsyncadd [#allocation4], %s476
      %s479 = sshll.u32 [#allocation10], 4
      %s480 = int_to_ptr.vmem [resolvable:$true] %s479
      %482 = dma.vmem_to_hbm [thread:$0]  %s480, 128, %s7, [#allocation4]
    $region49: #{tpu_custom_call.1} parent=1 // pred_fallthru
      _
    // Predicated region
    $region50: #{tpu_custom_call.1} parent=1 // pred_check
      _
    $region51: #{tpu_custom_call.1} parent=1 // pred_check_branch
      %484 = sbr.rel (0) target = $region53
    $region52: #{tpu_custom_call.1} parent=1 // pred_region
      %485 = dma.done [#allocation4], 128
    $region53: #{tpu_custom_call.1} parent=1 // pred_fallthru
      _
    %486 = vsyncpa [#allocation3], 1
    %487 = vsyncpa [#allocation6], 1
    %488 = vsyncpa [#allocation9], 1
    %489 = vsyncpa [#allocation4], 1

</llo_original>
